<compile_context>
chip_gen: v5e
topology: v5e:2x2
jax: 0.10.0
libtpu: 0.0.40
codegen_flags: <defaults>
</compile_context>

<pallas_src>
from functools import partial

import jax
import jax.numpy as jnp
from jax.experimental import pallas as pl
from jax.experimental.pallas import tpu as pltpu


def _conv_bn_lrelu_kernel(x_ref, w_ref, shift_ref, o_ref, *, K, Ho, stride, neg_slope):
    # x_ref:     (1, H, W*Cin)        compute dtype (bf16/f32), one image
    # w_ref:     (K, W*Cin, Wo*Cout)  banded conv weight, BN scale folded in
    # shift_ref: (1, Wo*Cout)         folded BN shift, tiled over Wo (f32)
    # o_ref:     (1, Ho, Wo*Cout)     f32 output (row-major NHWC)
    acc = jnp.zeros(o_ref.shape[1:], jnp.float32)          # (Ho, Wo*Cout)
    span = (Ho - 1) * stride + 1
    for kh in range(K):                                    # K static MXU matmuls
        rows = x_ref[0, pl.ds(kh, span), :]                # (span, W*Cin)
        if stride > 1:
            rows = rows[::stride, :]                       # (Ho, W*Cin)
        acc = acc + jnp.dot(rows, w_ref[kh], preferred_element_type=jnp.float32)
    y = acc + shift_ref[...]                               # f32 epilogue (v5e-safe)
    o_ref[0] = jnp.where(y >= 0, y, neg_slope * y).astype(o_ref.dtype)


def _fold_bn(weight, gamma, beta, running_mean, running_var, eps):
    scale = gamma / jnp.sqrt(running_var + eps)            # (Cout,)
    shift = beta - running_mean * scale                    # (Cout,)
    w_scaled = weight * scale[:, None, None, None]         # (Cout, Cin, K, K)
    return w_scaled, shift


def _build_banded_weight(w_scaled, *, W, Wo, stride, dtype):
    """band[kh, (wo*stride+kw)*Cin + ci, wo*Cout + co] = w_scaled[co, ci, kh, kw]."""
    Cout, Cin, K, _ = w_scaled.shape
    w_t = jnp.transpose(w_scaled, (2, 1, 3, 0))            # (Kh, Cin, Kw, Cout)
    kh = jnp.arange(K)[:, None, None, None, None]
    ci = jnp.arange(Cin)[None, :, None, None, None]
    kw = jnp.arange(K)[None, None, :, None, None]
    wo = jnp.arange(Wo)[None, None, None, :, None]
    co = jnp.arange(Cout)[None, None, None, None, :]
    vals = jnp.broadcast_to(w_t[:, :, :, None, :], (K, Cin, K, Wo, Cout))
    rows = jnp.broadcast_to((wo * stride + kw) * Cin + ci, vals.shape)
    cols = jnp.broadcast_to(wo * Cout + co, vals.shape)
    khb = jnp.broadcast_to(kh, vals.shape)
    band = jnp.zeros((K, W * Cin, Wo * Cout), jnp.float32)
    band = band.at[khb, rows, cols].set(vals)
    return band.astype(dtype)


def conv_down_forward(x, weight, gamma, beta, running_mean, running_var, *,
                      stride=1, padding=0, eps=1e-5, neg_slope=0.2,
                      compute_dtype=jnp.bfloat16):
    """x: (N, Cin, H, W) f32; weight: (Cout, Cin, K, K) f32. Returns (N, Cout, Ho, Wo) f32."""
    N, Cin, H, W = x.shape
    Cout, _, K, _ = weight.shape

    # Single pass: NCHW -> channels-last with a flattened (W*Cin) lane dim,
    # cast to the matmul dtype (bf16 halves activation HBM traffic).
    x_nhwc = jnp.transpose(x, (0, 2, 3, 1))                # (N, H, W, Cin)
    if padding > 0:
        x_nhwc = jnp.pad(x_nhwc, ((0, 0), (padding, padding),
                                  (padding, padding), (0, 0)))
        H += 2 * padding
        W += 2 * padding
    Ho = (H - K) // stride + 1
    Wo = (W - K) // stride + 1
    x_flat = x_nhwc.reshape(N, H, W * Cin).astype(compute_dtype)

    # Fold BatchNorm (inference) scale into the conv weight; keep only shift.
    w_scaled, shift = _fold_bn(weight, gamma, beta, running_mean, running_var, eps)
    band = _build_banded_weight(w_scaled, W=W, Wo=Wo, stride=stride, dtype=compute_dtype)
    shift_tile = jnp.tile(shift.astype(jnp.float32), Wo).reshape(1, Wo * Cout)

    kernel = partial(_conv_bn_lrelu_kernel, K=K, Ho=Ho, stride=stride,
                     neg_slope=neg_slope)
    out = pl.pallas_call(
        kernel,
        out_shape=jax.ShapeDtypeStruct((N, Ho, Wo * Cout), jnp.float32),
        grid_spec=pltpu.PrefetchScalarGridSpec(
            num_scalar_prefetch=0,
            grid=(N,),
            in_specs=[
                pl.BlockSpec((1, H, W * Cin), lambda n: (n, 0, 0)),
                pl.BlockSpec((K, W * Cin, Wo * Cout), lambda n: (0, 0, 0)),
                pl.BlockSpec((1, Wo * Cout), lambda n: (0, 0)),
            ],
            out_specs=pl.BlockSpec((1, Ho, Wo * Cout), lambda n: (n, 0, 0)),
        ),
        compiler_params=pltpu.CompilerParams(dimension_semantics=("parallel",)),
    )(x_flat, band, shift_tile)

    # (N, Ho, Wo*Cout) is row-major NHWC already: the reshape is free, one
    # transpose back to NCHW to match the PyTorch module's output layout.
    return jnp.transpose(out.reshape(N, Ho, Wo, Cout), (0, 3, 1, 2))


def _reference(x, weight, gamma, beta, running_mean, running_var,
               *, stride=1, padding=0, eps=1e-5, neg_slope=0.2):
    y = jax.lax.conv_general_dilated(
        x, weight, window_strides=(stride, stride),
        padding=[(padding, padding), (padding, padding)],
        dimension_numbers=("NCHW", "OIHW", "NCHW"))
    scale = gamma / jnp.sqrt(running_var + eps)
    shift = beta - running_mean * scale
    y = y * scale[None, :, None, None] + shift[None, :, None, None]
    return jnp.where(y >= 0, y, neg_slope * y)


if __name__ == "__main__":
    key = jax.random.PRNGKey(0)
    k_x, k_w, k_g, k_b, k_m, k_v = jax.random.split(key, 6)

    N, Cin, H, W = 2, 4, 16, 16
    Cout, K = 8, 3

    x = jax.random.normal(k_x, (N, Cin, H, W), dtype=jnp.float32)

    # deterministic parameter init (shapes from the module's __init__)
    bound = 1.0 / jnp.sqrt(Cin * K * K)
    weight = jax.random.uniform(k_w, (Cout, Cin, K, K), jnp.float32, -bound, bound)
    gamma = jax.random.uniform(k_g, (Cout,), jnp.float32, 0.5, 1.5)
    beta = 0.1 * jax.random.normal(k_b, (Cout,), jnp.float32)
    running_mean = 0.1 * jax.random.normal(k_m, (Cout,), jnp.float32)
    running_var = jax.random.uniform(k_v, (Cout,), jnp.float32, 0.5, 1.5)

    ref = _reference(x, weight, gamma, beta, running_mean, running_var)

    # exact path: f32 matmul operands, tight tolerance
    out_f32 = jax.block_until_ready(conv_down_forward(
        x, weight, gamma, beta, running_mean, running_var,
        compute_dtype=jnp.float32))
    assert out_f32.shape == (N, Cout, H - K + 1, W - K + 1), out_f32.shape
    assert jnp.allclose(out_f32, ref, rtol=1e-3, atol=1e-3), \
        float(jnp.max(jnp.abs(out_f32 - ref)))

    # default fast path: bf16 matmul operands (f32 accumulate + epilogue),
    # looser tolerance to account for bf16 input rounding
    out = jax.block_until_ready(conv_down_forward(
        x, weight, gamma, beta, running_mean, running_var))
    assert out.shape == (N, Cout, H - K + 1, W - K + 1), out.shape
    assert jnp.allclose(out, ref, rtol=5e-2, atol=5e-2), \
        float(jnp.max(jnp.abs(out - ref)))

    print("KERNEL_OK")
</pallas_src>

<mosaic_0001>
module attributes {stable_mosaic.version = 11 : i64} {
  func.func @_conv_bn_lrelu_kernel(%arg0: i32, %arg1: memref<1x16x64xf32, #tpu.memory_space<vmem>>, %arg2: memref<3x64x112xf32, #tpu.memory_space<vmem>>, %arg3: memref<1x112xf32, #tpu.memory_space<vmem>>, %arg4: memref<1x14x112xf32, #tpu.memory_space<vmem>>) attributes {dimension_semantics = [#tpu.dimension_semantics<parallel>], iteration_bounds = array<i64: 2>, scalar_prefetch = 0 : i64, scratch_operands = 0 : i64, tpu.core_type = #tpu.core_type<tc>, window_params = [{transform_indices = @transform_0, window_bounds = array<i64: 1, 16, 64>}, {pipeline_mode = #tpu.pipeline_mode<synchronous>, transform_indices = @transform_1, window_bounds = array<i64: 3, 64, 112>}, {pipeline_mode = #tpu.pipeline_mode<synchronous>, transform_indices = @transform_2, window_bounds = array<i64: 1, 112>}, {transform_indices = @transform_3, window_bounds = array<i64: 1, 14, 112>}]} {
    %cst = arith.constant 0.000000e+00 : f32
    %0 = vector.broadcast %cst : f32 to vector<14x112xf32>
    %c0 = arith.constant 0 : index
    %c0_0 = arith.constant 0 : index
    %c0_1 = arith.constant 0 : index
    %1 = vector.load %arg1[%c0, %c0_0, %c0_1] : memref<1x16x64xf32, #tpu.memory_space<vmem>>, vector<1x14x64xf32>
    %2 = vector.shape_cast %1 : vector<1x14x64xf32> to vector<14x64xf32>
    %c0_2 = arith.constant 0 : index
    %c0_3 = arith.constant 0 : index
    %c0_4 = arith.constant 0 : index
    %3 = vector.load %arg2[%c0_2, %c0_3, %c0_4] : memref<3x64x112xf32, #tpu.memory_space<vmem>>, vector<1x64x112xf32>
    %4 = vector.shape_cast %3 : vector<1x64x112xf32> to vector<64x112xf32>
    %cst_5 = arith.constant dense<0.000000e+00> : vector<14x112xf32>
    %5 = tpu.matmul %2, %4, %cst_5 {dimension_numbers = #tpu.dot_dimension_numbers<[1], [0], [0], [1], [0, 0, 1, 1], [], []>} : vector<14x64xf32>, vector<64x112xf32>, vector<14x112xf32> -> vector<14x112xf32>
    %6 = arith.addf %0, %5 : vector<14x112xf32>
    %c0_6 = arith.constant 0 : index
    %c1 = arith.constant 1 : index
    %c0_7 = arith.constant 0 : index
    %7 = vector.load %arg1[%c0_6, %c1, %c0_7] : memref<1x16x64xf32, #tpu.memory_space<vmem>>, vector<1x14x64xf32>
    %8 = vector.shape_cast %7 : vector<1x14x64xf32> to vector<14x64xf32>
    %c1_8 = arith.constant 1 : index
    %c0_9 = arith.constant 0 : index
    %c0_10 = arith.constant 0 : index
    %9 = vector.load %arg2[%c1_8, %c0_9, %c0_10] : memref<3x64x112xf32, #tpu.memory_space<vmem>>, vector<1x64x112xf32>
    %10 = vector.shape_cast %9 : vector<1x64x112xf32> to vector<64x112xf32>
    %cst_11 = arith.constant dense<0.000000e+00> : vector<14x112xf32>
    %11 = tpu.matmul %8, %10, %cst_11 {dimension_numbers = #tpu.dot_dimension_numbers<[1], [0], [0], [1], [0, 0, 1, 1], [], []>} : vector<14x64xf32>, vector<64x112xf32>, vector<14x112xf32> -> vector<14x112xf32>
    %12 = arith.addf %6, %11 : vector<14x112xf32>
    %c0_12 = arith.constant 0 : index
    %c2 = arith.constant 2 : index
    %c0_13 = arith.constant 0 : index
    %13 = vector.load %arg1[%c0_12, %c2, %c0_13] : memref<1x16x64xf32, #tpu.memory_space<vmem>>, vector<1x14x64xf32>
    %14 = vector.shape_cast %13 : vector<1x14x64xf32> to vector<14x64xf32>
    %c2_14 = arith.constant 2 : index
    %c0_15 = arith.constant 0 : index
    %c0_16 = arith.constant 0 : index
    %15 = vector.load %arg2[%c2_14, %c0_15, %c0_16] : memref<3x64x112xf32, #tpu.memory_space<vmem>>, vector<1x64x112xf32>
    %16 = vector.shape_cast %15 : vector<1x64x112xf32> to vector<64x112xf32>
    %cst_17 = arith.constant dense<0.000000e+00> : vector<14x112xf32>
    %17 = tpu.matmul %14, %16, %cst_17 {dimension_numbers = #tpu.dot_dimension_numbers<[1], [0], [0], [1], [0, 0, 1, 1], [], []>} : vector<14x64xf32>, vector<64x112xf32>, vector<14x112xf32> -> vector<14x112xf32>
    %18 = arith.addf %12, %17 : vector<14x112xf32>
    %c0_18 = arith.constant 0 : index
    %c0_19 = arith.constant 0 : index
    %19 = vector.load %arg3[%c0_18, %c0_19] : memref<1x112xf32, #tpu.memory_space<vmem>>, vector<1x112xf32>
    %20 = vector.broadcast %19 : vector<1x112xf32> to vector<14x112xf32>
    %21 = arith.addf %18, %20 : vector<14x112xf32>
    %cst_20 = arith.constant 0.000000e+00 : f32
    %22 = vector.broadcast %cst_20 : f32 to vector<14x112xf32>
    %23 = arith.cmpf oge, %21, %22 : vector<14x112xf32>
    %cst_21 = arith.constant 2.000000e-01 : f32
    %24 = vector.broadcast %cst_21 : f32 to vector<14x112xf32>
    %25 = arith.mulf %24, %21 : vector<14x112xf32>
    %26 = arith.select %23, %21, %25 : vector<14x112xi1>, vector<14x112xf32>
    %c0_22 = arith.constant 0 : index
    %c0_23 = arith.constant 0 : index
    %c0_24 = arith.constant 0 : index
    %27 = vector.load %arg4[%c0_22, %c0_23, %c0_24] : memref<1x14x112xf32, #tpu.memory_space<vmem>>, vector<1x14x112xf32>
    %28 = vector.shape_cast %27 : vector<1x14x112xf32> to vector<14x112xf32>
    %29 = vector.shape_cast %26 : vector<14x112xf32> to vector<1x14x112xf32>
    tpu.vector_store %arg4[%c0_22, %c0_23, %c0_24], %29 {strides = array<i32>} : memref<1x14x112xf32, #tpu.memory_space<vmem>>, vector<1x14x112xf32>,
    return
  }
  func.func @transform_0(%arg0: i32) -> (i32, i32, i32) {
    %c0_i32 = arith.constant 0 : i32
    %c0_i32_0 = arith.constant 0 : i32
    %c0_i32_1 = arith.constant 0 : i32
    return %arg0, %c0_i32, %c0_i32_0 : i32, i32, i32
  }
  func.func @transform_1(%arg0: i32) -> (i32, i32, i32) {
    %c0_i32 = arith.constant 0 : i32
    %c0_i32_0 = arith.constant 0 : i32
    %c0_i32_1 = arith.constant 0 : i32
    %c0_i32_2 = arith.constant 0 : i32
    return %c0_i32, %c0_i32_0, %c0_i32_1 : i32, i32, i32
  }
  func.func @transform_2(%arg0: i32) -> (i32, i32) {
    %c0_i32 = arith.constant 0 : i32
    %c0_i32_0 = arith.constant 0 : i32
    %c0_i32_1 = arith.constant 0 : i32
    return %c0_i32, %c0_i32_0 : i32, i32
  }
  func.func @transform_3(%arg0: i32) -> (i32, i32, i32) {
    %c0_i32 = arith.constant 0 : i32
    %c0_i32_0 = arith.constant 0 : i32
    %c0_i32_1 = arith.constant 0 : i32
    return %arg0, %c0_i32, %c0_i32_0 : i32, i32, i32
  }
}

</mosaic_0001>

<llo_original>
// kernel: tpu_custom_call.1
$region0: #{tpu_custom_call.1}
  #allocation0 [shape = 'u32[]', space=smem, size = 0x4, offset = 0x4, fixed_abs, tag = 'smem constant byte address 0x4 - core index']
  #allocation1 [shape = 'u32[72,128]{1,0:T(1,128)}', space=vmem, size = 0x9000, scoped, tag = 'internal scratch']
  %s0 = inlined_call_operand.hbm [shape: f32[2,16,64], index: 0, kind: input, shape index: {}]
  %s1 = inlined_call_operand.hbm [shape: f32[3,64,112], index: 1, kind: input, shape index: {}]
  %s2 = inlined_call_operand.vmem [shape: f32[1,112], index: 2, kind: input, shape index: {}]
  %s3 = inlined_call_operand.vmem [shape: f32[2,14,112], index: 3, kind: output, shape index: {}]
  %s4 = sld [smem:[#allocation0]]
  $region53: #{tpu_custom_call.1} parent=0
    _
  %s6 = ssub.s32 1, %s4
  %s7 = scalar_select 0, %s6, %s4
  $region1: #{tpu_custom_call.1} parent=0
    #allocation2 [shape = 'u8[16384]{0}', space=vmem, size = 0x4000, scoped, tag = 'input window, operand 0']
    #allocation3 [shape = 's32[2]{0}', space=sflag, size = 0x8, scoped, tag = 'scoped memory for tpu_custom_call.1']
    #allocation4 [shape = 'u8[98304]{0}', space=vmem, size = 0x18000, scoped, tag = 'input window, operand 1, single buffered']
    #allocation5 [shape = 's32[1]{0}', space=sflag, size = 0x4, scoped, tag = 'scoped memory for tpu_custom_call.1']
    %8 = vsyncpa [#allocation3], 0
    %s9 = scalar_lea.sflag [#allocation3], 1
    %10 = vsyncpa %s9, 0
    %11 = vsyncpa [#allocation5], 0
    loop: start=0, step=1, limit=4
    $region2: #{tpu_custom_call.1} parent=1 // loop_pre_header
      _
    $region3: #{tpu_custom_call.1} parent=1 // loop_header
      %s13 = sphi 0, %s17
      %p14 = scmp.ge.s32.totalorder %s13, 4
      %s23 = sphi 0, %s25
      %s26 = sphi 0, %s23
      %s27 = sphi 0, %s26
      %s43 = sphi 0, %s27
      %s47 = sphi 0, %s47
      %s49 = sphi 0, %s47
      %s50 = sphi 0, %s49
      %s64 = sphi 0, %s50
      %s68 = sphi 0, %s68
      %s70 = sphi 0, %s68
      %s71 = sphi 0, %s70
      %s85 = sphi 0, %s71
      %s91 = sphi 0, %s93
      %s94 = sphi 0, %s91
      %s95 = sphi 0, %s94
      %s111 = sphi 0, %s95
    $region4: #{tpu_custom_call.1} parent=1 // loop_header_branch
      %16 = sbr.rel (%p14) target = $region8
    $region5: #{tpu_custom_call.1} parent=1 // loop_body
      %s18 = ssub.s32 %s13, 1
      %s19 = ssub.s32 %s13, 2
      %s20 = sadd.s32 %s13, 1
      %s21 = ssub.s32 %s13, %s20
      %p22 = scmp.eq.s32.totalorder %s21, 0
      %s24 = sadd.s32 %s23, 1
      %s25 = scalar_select %p22, %s23, %s24
      %p28 = pneg %p22
      %p29 = scmp.eq.s32.totalorder %s13, 1
      %p30 = por %p28, %p29
      %p31 = scmp.ne.s32.totalorder %s23, %s26
      %p32 = scmp.eq.s32.totalorder %s13, 0
      %p33 = por %p31, %p32
      %p34 = scmp.ne.s32.totalorder %s23, %s26
      %p35 = scmp.eq.s32.totalorder %s18, 1
      %p36 = por %p34, %p35
      %p37 = scmp.ne.s32.totalorder %s26, %s27
      %p38 = scmp.eq.s32.totalorder %s18, 0
      %p39 = por %p37, %p38
      %p40 = scmp.ne.s32.totalorder %s26, %s27
      %p41 = scmp.eq.s32.totalorder %s19, 1
      %p42 = por %p40, %p41
      %p44 = scmp.ne.s32.totalorder %s27, %s43
      %p45 = scmp.eq.s32.totalorder %s19, 0
      %p46 = por %p44, %p45
      %s48 = sadd.s32 %s47, 1
      %p51 = scmp.eq.s32.totalorder %s13, 1
      %p52 = scmp.ne.s32.totalorder %s47, %s49
      %p53 = scmp.eq.s32.totalorder %s13, 0
      %p54 = por %p52, %p53
      %p55 = scmp.ne.s32.totalorder %s47, %s49
      %p56 = scmp.eq.s32.totalorder %s18, 1
      %p57 = por %p55, %p56
      %p58 = scmp.ne.s32.totalorder %s49, %s50
      %p59 = scmp.eq.s32.totalorder %s18, 0
      %p60 = por %p58, %p59
      %p61 = scmp.ne.s32.totalorder %s49, %s50
      %p62 = scmp.eq.s32.totalorder %s19, 1
      %p63 = por %p61, %p62
      %p65 = scmp.ne.s32.totalorder %s50, %s64
      %p66 = scmp.eq.s32.totalorder %s19, 0
      %p67 = por %p65, %p66
      %s69 = sadd.s32 %s68, 1
      %p72 = scmp.eq.s32.totalorder %s13, 1
      %p73 = scmp.ne.s32.totalorder %s68, %s70
      %p74 = scmp.eq.s32.totalorder %s13, 0
      %p75 = por %p73, %p74
      %p76 = scmp.ne.s32.totalorder %s68, %s70
      %p77 = scmp.eq.s32.totalorder %s18, 1
      %p78 = por %p76, %p77
      %p79 = scmp.ne.s32.totalorder %s70, %s71
      %p80 = scmp.eq.s32.totalorder %s18, 0
      %p81 = por %p79, %p80
      %p82 = scmp.ne.s32.totalorder %s70, %s71
      %p83 = scmp.eq.s32.totalorder %s19, 1
      %p84 = por %p82, %p83
      %p86 = scmp.ne.s32.totalorder %s71, %s85
      %p87 = scmp.eq.s32.totalorder %s19, 0
      %p88 = por %p86, %p87
      %s89 = ssub.s32 %s13, %s20
      %p90 = scmp.eq.s32.totalorder %s89, 0
      %s92 = sadd.s32 %s91, 1
      %s93 = scalar_select %p90, %s91, %s92
      %p96 = pneg %p90
      %p97 = scmp.eq.s32.totalorder %s13, 1
      %p98 = por %p96, %p97
      %p99 = scmp.ne.s32.totalorder %s91, %s94
      %p100 = scmp.eq.s32.totalorder %s13, 0
      %p101 = por %p99, %p100
      %p102 = scmp.ne.s32.totalorder %s91, %s94
      %p103 = scmp.eq.s32.totalorder %s18, 1
      %p104 = por %p102, %p103
      %p105 = scmp.ne.s32.totalorder %s94, %s95
      %p106 = scmp.eq.s32.totalorder %s18, 0
      %p107 = por %p105, %p106
      %p108 = scmp.ne.s32.totalorder %s94, %s95
      %p109 = scmp.eq.s32.totalorder %s19, 1
      %p110 = por %p108, %p109
      %p112 = scmp.ne.s32.totalorder %s95, %s111
      %p113 = scmp.eq.s32.totalorder %s19, 0
      %p114 = por %p112, %p113
      %p115 = scmp.le.s32.totalorder 1, %s13
      %p116 = scmp.lt.s32.totalorder %s13, 3
      %p117 = pnand %p115, %p116
      %p118 = pneg %p117
      // Predicated region
      $region9: #{tpu_custom_call.1} parent=5 // pred_check
        _
      $region10: #{tpu_custom_call.1} parent=5 // pred_check_branch
        %120 = sbr.rel (%p117) target = $region12
      $region11: #{tpu_custom_call.1} parent=5 // pred_region
        %s121 = ssub.s32 %s13, 1
        // Predicated region
        $region13: #{tpu_custom_call.1} parent=11 // pred_check
          %p122 = pneg %p60
        $region14: #{tpu_custom_call.1} parent=11 // pred_check_branch
          %124 = sbr.rel (%p122) target = $region16
        $region15: #{tpu_custom_call.1} parent=11 // pred_region
          %126 = vsyncadd [#allocation5], 0
          %s127 = sshll.u32 %s1, 4
          %s128 = int_to_ptr.hbm [resolvable:$true] %s127
          %s129 = sshll.u32 [#allocation4], 4
          %s130 = int_to_ptr.vmem [resolvable:$true] %s129
          %135 = dma.hbm_to_vmem [thread:$0]  %s128, 3072, %s130, [#allocation5], 128, 128, 8
        $region16: #{tpu_custom_call.1} parent=11 // pred_fallthru
          _
        // Predicated region
        $region17: #{tpu_custom_call.1} parent=11 // pred_check
          %p136 = pneg %p81
        $region18: #{tpu_custom_call.1} parent=11 // pred_check_branch
          %138 = sbr.rel (%p136) target = $region20
        $region19: #{tpu_custom_call.1} parent=11 // pred_region
          _
        $region20: #{tpu_custom_call.1} parent=11 // pred_fallthru
          _
      $region12: #{tpu_custom_call.1} parent=5 // pred_fallthru
        _
      %p139 = scmp.lt.s32.totalorder %s13, 2
      // Predicated region
      $region21: #{tpu_custom_call.1} parent=5 // pred_check
        %p140 = pneg %p139
      $region22: #{tpu_custom_call.1} parent=5 // pred_check_branch
        %142 = sbr.rel (%p140) target = $region24
      $region23: #{tpu_custom_call.1} parent=5 // pred_region
        // Predicated region
        $region25: #{tpu_custom_call.1} parent=23 // pred_check
          %p143 = pneg %p33
        $region26: #{tpu_custom_call.1} parent=23 // pred_check_branch
          %145 = sbr.rel (%p143) target = $region28
        $region27: #{tpu_custom_call.1} parent=23 // pred_region
          %s146 = sand.u32 %s23, 1
          %s147 = scalar_lea.sflag [#allocation3], %s146
          %s148 = sand.u32 %s23, 1
          %s149 = smul.addr %s148, 16
          %s150 = scalar_lea.vmem [#allocation2], %s149
          %152 = vsyncadd %s147, 0
          %s153 = smul.addr %s13, 2
          %s154 = smul.addr %s153, 8
          %s155 = scalar_lea.hbm %s0, %s154
          %s156 = sshll.u32 %s155, 4
          %s157 = int_to_ptr.hbm [resolvable:$true] %s156
          %s158 = sshll.u32 %s150, 4
          %s159 = int_to_ptr.vmem [resolvable:$true] %s158
          %164 = dma.hbm_to_vmem [thread:$0]  %s157, 256, %s159, %s147, 128, 128, 8
        $region28: #{tpu_custom_call.1} parent=23 // pred_fallthru
          _
      $region24: #{tpu_custom_call.1} parent=5 // pred_fallthru
        _
      %p165 = scmp.le.s32.totalorder 1, %s13
      %p166 = scmp.lt.s32.totalorder %s13, 3
      %p167 = pnand %p165, %p166
      %p168 = pneg %p167
      // Predicated region
      $region29: #{tpu_custom_call.1} parent=5 // pred_check
        _
      $region30: #{tpu_custom_call.1} parent=5 // pred_check_branch
        %170 = sbr.rel (%p167) target = $region32
      $region31: #{tpu_custom_call.1} parent=5 // pred_region
        %s171 = ssub.s32 %s13, 1
        %s172 = sand.u32 %s26, 1
        %s173 = scalar_lea.sflag [#allocation3], %s172
        %s174 = sand.u32 %s26, 1
        %s175 = smul.addr %s174, 16
        %s176 = scalar_lea.vmem [#allocation2], %s175
        // Predicated region
        $region33: #{tpu_custom_call.1} parent=31 // pred_check
          %p177 = pneg %p39
        $region34: #{tpu_custom_call.1} parent=31 // pred_check_branch
          %179 = sbr.rel (%p177) target = $region36
        $region35: #{tpu_custom_call.1} parent=31 // pred_region
          %181 = dma.done %s173, 256
        $region36: #{tpu_custom_call.1} parent=31 // pred_fallthru
          _
        // Predicated region
        $region37: #{tpu_custom_call.1} parent=31 // pred_check
          %p182 = pneg %p60
        $region38: #{tpu_custom_call.1} parent=31 // pred_check_branch
          %184 = sbr.rel (%p182) target = $region40
        $region39: #{tpu_custom_call.1} parent=31 // pred_region
          %186 = dma.done [#allocation5], 3072
        $region40: #{tpu_custom_call.1} parent=31 // pred_fallthru
          _
        %s187 = sand.u32 %s26, 1
        %s188 = scalar_lea.sflag [#allocation3], %s187
        %s189 = sand.u32 %s26, 1
        %s190 = smul.addr %s189, 16
        %s191 = scalar_lea.vmem [#allocation2], %s190
        %p192 = pneg %p39
        %p193 = pneg %p36
        %p194 = pneg %p60
        %p195 = pneg %p57
        %p196 = pneg %p81
        %p197 = pneg %p78
        %p198 = pneg %p107
        %p199 = pneg %p104
        %p200 = scmp.lt.s32.totalorder %s18, 1
        %s201 = scalar_select %p200, %s18, 1
        %s202 = smul.addr %s201, 2
        %s203 = smul.addr %s202, 8
        %s204 = scalar_lea.vmem %s3, %s203
        %p205 = scmp.lt.s32.totalorder %s18, 1
        %s206 = scalar_select %p205, %s18, 1
        %s207 = smul.addr %s206, 2
        %s208 = smul.addr %s207, 8
        %s209 = scalar_lea.vmem %s3, %s208
        %v210 = vld [vmem:[%s176] sm:$0xff]
        %v211 = vld [vmem:[%s176 + $0x8] sm:$0x3f]
        %v212 = vld [vmem:[#allocation4] sm:$0xff]
        %v213 = vld [vmem:[#allocation4 + $0x8] sm:$0xff]
        %v214 = vld [vmem:[#allocation4 + $0x10] sm:$0xff]
        %v215 = vld [vmem:[#allocation4 + $0x18] sm:$0xff]
        %v216 = vld [vmem:[#allocation4 + $0x20] sm:$0xff]
        %v217 = vld [vmem:[#allocation4 + $0x28] sm:$0xff]
        %v218 = vld [vmem:[#allocation4 + $0x30] sm:$0xff]
        %v219 = vld [vmem:[#allocation4 + $0x38] sm:$0xff]
        %v220 = vld [vmem:[%s176 + $0x1] sm:$0xff]
        %v221 = vld [vmem:[%s176 + $0x9] sm:$0x3f]
        %s222 = scalar_lea.vmem [#allocation4], 64
        %v223 = vld [vmem:[%s222] sm:$0xff]
        %v224 = vld [vmem:[%s222 + $0x8] sm:$0xff]
        %v225 = vld [vmem:[%s222 + $0x10] sm:$0xff]
        %v226 = vld [vmem:[%s222 + $0x18] sm:$0xff]
        %v227 = vld [vmem:[%s222 + $0x20] sm:$0xff]
        %v228 = vld [vmem:[%s222 + $0x28] sm:$0xff]
        %v229 = vld [vmem:[%s222 + $0x30] sm:$0xff]
        %v230 = vld [vmem:[%s222 + $0x38] sm:$0xff]
        %vm231 = vcmask 523264
        %v233 = vsel %vm231, %v220, 0
        %v236 = vsel %vm231, %v221, 0
        %238 = vmatpush.msra.mxu0 0.0
        %239 = vmatpush.msra.mxu0 0.0
        %240 = vmatpush.msra.mxu0 0.0
        %241 = vmatpush.msra.mxu0 0.0
        %242 = vmatpush.msra.mxu0 0.0
        %243 = vmatpush.msra.mxu0 0.0
        %244 = vmatpush.msra.mxu0 0.0
        %245 = vmatpush.msra.mxu0 0.0
        %246 = vmatpush.msra.mxu0 %v230
        %247 = vmatpush.msra.mxu0 %v229
        %248 = vmatpush.msra.mxu0 %v228
        %249 = vmatpush.msra.mxu0 %v227
        %250 = vmatpush.msra.mxu0 %v226
        %251 = vmatpush.msra.mxu0 %v225
        %252 = vmatpush.msra.mxu0 %v224
        %253 = vmatpush.msra.mxu0 %v223
        %254 = vmatmul.f32.gmra.mxu0 %v233
        %v255 = vpop.f32.mrf.mxu0
        %v256 = vadd.f32 0.0, %v255
        %257 = vmatmul.f32.gmra.mxu0 %v236
        %v258 = vpop.f32.mrf.mxu0
        %v259 = vadd.f32 0.0, %v258
        %260 = vdwg.mxu0
        %v262 = vsel %vm231, %v210, 0
        %v265 = vsel %vm231, %v211, 0
        %267 = vmatpush.msra.mxu0 0.0
        %268 = vmatpush.msra.mxu0 0.0
        %269 = vmatpush.msra.mxu0 0.0
        %270 = vmatpush.msra.mxu0 0.0
        %271 = vmatpush.msra.mxu0 0.0
        %272 = vmatpush.msra.mxu0 0.0
        %273 = vmatpush.msra.mxu0 0.0
        %274 = vmatpush.msra.mxu0 0.0
        %275 = vmatpush.msra.mxu0 %v219
        %276 = vmatpush.msra.mxu0 %v218
        %277 = vmatpush.msra.mxu0 %v217
        %278 = vmatpush.msra.mxu0 %v216
        %279 = vmatpush.msra.mxu0 %v215
        %280 = vmatpush.msra.mxu0 %v214
        %281 = vmatpush.msra.mxu0 %v213
        %282 = vmatpush.msra.mxu0 %v212
        %283 = vmatmul.f32.gmra.mxu0 %v262
        %v284 = vpop.f32.mrf.mxu0
        %v285 = vadd.f32 %v256, %v284
        %286 = vmatmul.f32.gmra.mxu0 %v265
        %v287 = vpop.f32.mrf.mxu0
        %v288 = vadd.f32 %v259, %v287
        %289 = vdwg.mxu0
        %v290 = vld [vmem:[%s176 + $0x2] sm:$0xff]
        %v291 = vld [vmem:[%s176 + $0xa] sm:$0x3f]
        %s292 = scalar_lea.vmem [#allocation4], 128
        %v293 = vld [vmem:[%s292] sm:$0xff]
        %v294 = vld [vmem:[%s292 + $0x8] sm:$0xff]
        %v295 = vld [vmem:[%s292 + $0x10] sm:$0xff]
        %v296 = vld [vmem:[%s292 + $0x18] sm:$0xff]
        %v297 = vld [vmem:[%s292 + $0x20] sm:$0xff]
        %v298 = vld [vmem:[%s292 + $0x28] sm:$0xff]
        %v299 = vld [vmem:[%s292 + $0x30] sm:$0xff]
        %v300 = vld [vmem:[%s292 + $0x38] sm:$0xff]
        %v302 = vsel %vm231, %v290, 0
        %v305 = vsel %vm231, %v291, 0
        %307 = vmatpush.msra.mxu0 0.0
        %308 = vmatpush.msra.mxu0 0.0
        %309 = vmatpush.msra.mxu0 0.0
        %310 = vmatpush.msra.mxu0 0.0
        %311 = vmatpush.msra.mxu0 0.0
        %312 = vmatpush.msra.mxu0 0.0
        %313 = vmatpush.msra.mxu0 0.0
        %314 = vmatpush.msra.mxu0 0.0
        %315 = vmatpush.msra.mxu0 %v300
        %316 = vmatpush.msra.mxu0 %v299
        %317 = vmatpush.msra.mxu0 %v298
        %318 = vmatpush.msra.mxu0 %v297
        %319 = vmatpush.msra.mxu0 %v296
        %320 = vmatpush.msra.mxu0 %v295
        %321 = vmatpush.msra.mxu0 %v294
        %322 = vmatpush.msra.mxu0 %v293
        %323 = vmatmul.f32.gmra.mxu0 %v302
        %v324 = vpop.f32.mrf.mxu0
        %v325 = vadd.f32 0.0, %v324
        %326 = vmatmul.f32.gmra.mxu0 %v305
        %v327 = vpop.f32.mrf.mxu0
        %v328 = vadd.f32 0.0, %v327
        %329 = vdwg.mxu0
        %v330 = vadd.f32 %v285, %v325
        %v331 = vadd.f32 %v288, %v328
        %v332 = vld [vmem:[%s2] sm:$0x1]
        %v334 = vperm.slane %v332, 0
        %v336 = vadd.f32 %v330, %v334
        %v337 = vadd.f32 %v331, %v334
        %vm338 = vcmp.ge.f32.partialorder %v336, 0.0
        %vm339 = vcmp.ge.f32.partialorder %v337, 0.0
        %v340 = vmul.f32 %v336, 0.2
        %v341 = vmul.f32 %v337, 0.2
        %v342 = vsel %vm338, %v336, %v340
        %v343 = vsel %vm339, %v337, %v341
        %vm344 = vcmask 916480
        %345 = vst.msk [vmem:[%s209] sm:$0xff] %vm344, %v342
        %vm346 = vcmask 914432
        %347 = vst.msk [vmem:[%s209 + $0x8] sm:$0x3f] %vm346, %v343
        %p348 = scmp.lt.s32.totalorder %s18, 1
        %s349 = scalar_select %p348, %s18, 1
        %s350 = smul.addr %s349, 2
        %s351 = smul.addr %s350, 8
        %s352 = scalar_lea.vmem %s3, %s351
        // Predicated region
        $region41: #{tpu_custom_call.1} parent=31 // pred_check
          %p353 = pneg %p104
        $region42: #{tpu_custom_call.1} parent=31 // pred_check_branch
          %355 = sbr.rel (%p353) target = $region44
        $region43: #{tpu_custom_call.1} parent=31 // pred_region
          _
        $region44: #{tpu_custom_call.1} parent=31 // pred_fallthru
          _
      $region32: #{tpu_custom_call.1} parent=5 // pred_fallthru
        _
      %p356 = scmp.le.s32.totalorder 2, %s13
      // Predicated region
      $region45: #{tpu_custom_call.1} parent=5 // pred_check
        %p357 = pneg %p356
      $region46: #{tpu_custom_call.1} parent=5 // pred_check_branch
        %359 = sbr.rel (%p357) target = $region48
      $region47: #{tpu_custom_call.1} parent=5 // pred_region
        %s360 = ssub.s32 %s13, 2
        // Predicated region
        $region49: #{tpu_custom_call.1} parent=47 // pred_check
          %p361 = pneg %p110
        $region50: #{tpu_custom_call.1} parent=47 // pred_check_branch
          %363 = sbr.rel (%p361) target = $region52
        $region51: #{tpu_custom_call.1} parent=47 // pred_region
          %p364 = scmp.lt.s32.totalorder %s19, 1
          %s365 = scalar_select %p364, %s19, 1
          %s366 = smul.addr %s365, 2
          %s367 = smul.addr %s366, 8
          %s368 = scalar_lea.vmem %s3, %s367
        $region52: #{tpu_custom_call.1} parent=47 // pred_fallthru
          _
      $region48: #{tpu_custom_call.1} parent=5 // pred_fallthru
        _
    $region6: #{tpu_custom_call.1} parent=1 // loop_footer
      %s17 = sadd.s32 1, %s13
    $region7: #{tpu_custom_call.1} parent=1 // loop_footer_branch
      %12 = sbr.rel target = $region3
    $region8: #{tpu_custom_call.1} parent=1 // loop_exit
      _
    %369 = vsyncpa [#allocation3], 1
    %s370 = scalar_lea.sflag [#allocation3], 1
    %371 = vsyncpa %s370, 1
    %372 = vsyncpa [#allocation5], 1

</llo_original>
